<compile_context>
chip_gen: v5e
topology: v5e:2x2
jax: 0.10.0
libtpu: 0.0.40
codegen_flags: <defaults>
</compile_context>

<pallas_src>
import numpy as np
import jax
import jax.numpy as jnp
from jax.experimental import pallas as pl
from jax.experimental.pallas import tpu as pltpu


def tam_kernel(x_ref, w1_ref, b1_ref, w2_ref, b2_ref, o_ref):
    # x_ref : (TB, C, HW)  block of scrambled feature slabs
    # w1_ref: (Cr, C)      conv1 1x1 weight
    # b1_ref: (Cr, 1)      conv1 bias (column)
    # w2_ref: (C, Cr)      conv2 1x1 weight
    # b2_ref: (C, 1)       conv2 bias (column)
    # o_ref : (TB, C, HW)  gated output block
    w1 = w1_ref[...]
    b1 = b1_ref[...]
    w2 = w2_ref[...]
    b2 = b2_ref[...]

    tb, c, hw = x_ref.shape
    inv_hw = 1.0 / float(hw)

    # Lane selector used to pack [avg | max] into one (C, 2) MXU operand
    # (avoids an in-kernel lane concatenate).
    lane2 = jax.lax.broadcasted_iota(jnp.int32, (c, 2), 1)

    for b in range(tb):  # TB is small (<= ~8): static unrolled loop
        slab = x_ref[b]                                            # (C, HW)

        # Adaptive avg / max pool to 1x1 -> column vectors (C, 1).
        avg_p = jnp.sum(slab, axis=-1, keepdims=True) * inv_hw
        max_p = jnp.max(slab, axis=-1, keepdims=True)

        # Fused shared MLP: one matmul pair handles both pooled vectors.
        pools = jnp.where(lane2 == 0, avg_p, max_p)                # (C, 2)
        h1 = jnp.dot(w1, pools, preferred_element_type=jnp.float32) + b1
        h1 = jnp.maximum(h1, 0.0)                                  # (Cr, 2)
        o2 = jnp.dot(w2, h1, preferred_element_type=jnp.float32) + b2  # (C, 2)
        # sum of the two columns == mlp(avg) + mlp(max)  (biases included
        # twice, exactly as in the PyTorch module).
        gate = jax.nn.sigmoid(jnp.sum(o2, axis=-1, keepdims=True))  # (C, 1)

        # Re-read the slab from the VMEM ref for the gated store
        # (keeps vreg pressure bounded when C*HW is large).
        o_ref[b] = x_ref[b] * gate


def _pick_tb(batch, c, hw, target_bytes=2 * 1024 * 1024):
    """Largest divisor of `batch` whose input block stays under target_bytes."""
    per_batch = c * hw * 4  # f32
    tb = max(1, min(batch, target_bytes // max(per_batch, 1)))
    while batch % tb != 0:
        tb -= 1
    return tb


def tam_block_2d(x, w1, b1, w2, b2):
    """x: (B, S, C) float32; w1/b1/w2/b2: squeezed 1x1-conv parameters."""
    B, S, C = x.shape
    N = S - 1
    h = int(np.sqrt(N))
    assert h * h == N, "N must be a perfect square"
    HW = N
    Cr = w1.shape[0]

    # ---- glue (mirrors the PyTorch tensor manipulation) ----
    cls_tok = x[:, :1, :]                                   # (B, 1, C)
    feat_nbc = jnp.transpose(x[:, 1:, :], (1, 0, 2))        # (N, B, C)
    # PyTorch: feat.reshape(B, C, h, w) -- a flat row-major reshape.
    feat_scr = feat_nbc.reshape(B, C, HW)                   # (B, C, HW)

    w1m = w1.reshape(Cr, C)
    w2m = w2.reshape(C, Cr)
    b1c = b1.reshape(Cr, 1)
    b2c = b2.reshape(C, 1)

    # ---- hot path in Pallas: pool + fused MLP + sigmoid gate + multiply ----
    TB = _pick_tb(B, C, HW)
    grid = (B // TB,)

    gated = pl.pallas_call(
        tam_kernel,
        out_shape=jax.ShapeDtypeStruct((B, C, HW), jnp.float32),
        grid=grid,
        in_specs=[
            pl.BlockSpec((TB, C, HW), lambda i: (i, 0, 0)),   # streamed input
            pl.BlockSpec((Cr, C), lambda i: (0, 0)),          # VMEM-resident
            pl.BlockSpec((Cr, 1), lambda i: (0, 0)),
            pl.BlockSpec((C, Cr), lambda i: (0, 0)),
            pl.BlockSpec((C, 1), lambda i: (0, 0)),
        ],
        out_specs=pl.BlockSpec((TB, C, HW), lambda i: (i, 0, 0)),
        compiler_params=pltpu.CompilerParams(
            dimension_semantics=("parallel",),
            vmem_limit_bytes=32 * 1024 * 1024,
        ),
    )(feat_scr, w1m, b1c, w2m, b2c)

    # ---- glue: reshape back and re-attach the cls token ----
    res_bnc = jnp.transpose(gated.reshape(N, B, C), (1, 0, 2))  # (B, N, C)
    return jnp.concatenate([cls_tok, res_bnc], axis=1)          # (B, S, C)


def tam_block_2d_ref(x, w1, b1, w2, b2):
    """Pure-JAX reference mirroring the PyTorch forward, for verification."""
    B, S, C = x.shape
    N = S - 1
    h = int(np.sqrt(N))
    xp = jnp.transpose(x, (1, 0, 2))
    cls_token = xp[:1]
    feat = xp[1:].reshape(B, C, h, h)
    avg_p = jnp.mean(feat, axis=(2, 3))
    max_p = jnp.max(feat, axis=(2, 3))

    def mlp(p):
        h1 = jnp.maximum(p @ w1.T + b1, 0.0)
        return h1 @ w2.T + b2

    gate = jax.nn.sigmoid(mlp(avg_p) + mlp(max_p))
    res = feat * gate[:, :, None, None]
    res = res.reshape(N, B, C)
    res = jnp.concatenate([cls_token, res], axis=0)
    return jnp.transpose(res, (1, 0, 2))


if __name__ == "__main__":
    # Small shapes consistent with the module: B=2, C=32 (in_channels),
    # ratio=2, spatial h=w=4 -> N=16 patch tokens, S=17 (cls + patches).
    B, C, ratio = 2, 32, 2
    h = 4
    N = h * h
    S = N + 1
    Cr = C // ratio

    key = jax.random.PRNGKey(0)
    kx, kw1, kb1, kw2, kb2 = jax.random.split(key, 5)

    x = jax.random.normal(kx, (B, S, C), dtype=jnp.float32)
    w1 = jax.random.normal(kw1, (Cr, C), dtype=jnp.float32) * 0.05
    b1 = jax.random.normal(kb1, (Cr,), dtype=jnp.float32) * 0.05
    w2 = jax.random.normal(kw2, (C, Cr), dtype=jnp.float32) * 0.05
    b2 = jax.random.normal(kb2, (C,), dtype=jnp.float32) * 0.05

    out = jax.jit(tam_block_2d)(x, w1, b1, w2, b2)
    out = jax.block_until_ready(out)

    ref = tam_block_2d_ref(x, w1, b1, w2, b2)
    np.testing.assert_allclose(np.asarray(out), np.asarray(ref),
                               rtol=1e-5, atol=1e-5)

    print("KERNEL_OK")
</pallas_src>

<mosaic_0001>
module attributes {stable_mosaic.version = 11 : i64} {
  func.func @tam_kernel(%arg0: i32, %arg1: memref<2x32x16xf32, #tpu.memory_space<vmem>>, %arg2: memref<16x32xf32, #tpu.memory_space<vmem>>, %arg3: memref<16x1xf32, #tpu.memory_space<vmem>>, %arg4: memref<32x16xf32, #tpu.memory_space<vmem>>, %arg5: memref<32x1xf32, #tpu.memory_space<vmem>>, %arg6: memref<2x32x16xf32, #tpu.memory_space<vmem>>) attributes {dimension_semantics = [#tpu.dimension_semantics<parallel>], iteration_bounds = array<i64: 1>, scalar_prefetch = 0 : i64, scratch_operands = 0 : i64, tpu.core_type = #tpu.core_type<tc>, window_params = [{transform_indices = @transform_0, window_bounds = array<i64: 2, 32, 16>}, {pipeline_mode = #tpu.pipeline_mode<synchronous>, transform_indices = @transform_1, window_bounds = array<i64: 16, 32>}, {pipeline_mode = #tpu.pipeline_mode<synchronous>, transform_indices = @transform_2, window_bounds = array<i64: 16, 1>}, {pipeline_mode = #tpu.pipeline_mode<synchronous>, transform_indices = @transform_3, window_bounds = array<i64: 32, 16>}, {pipeline_mode = #tpu.pipeline_mode<synchronous>, transform_indices = @transform_4, window_bounds = array<i64: 32, 1>}, {transform_indices = @transform_5, window_bounds = array<i64: 2, 32, 16>}]} {
    %c0 = arith.constant 0 : index
    %c0_0 = arith.constant 0 : index
    %0 = vector.load %arg2[%c0, %c0_0] : memref<16x32xf32, #tpu.memory_space<vmem>>, vector<16x32xf32>
    %c0_1 = arith.constant 0 : index
    %c0_2 = arith.constant 0 : index
    %1 = vector.load %arg3[%c0_1, %c0_2] : memref<16x1xf32, #tpu.memory_space<vmem>>, vector<16x1xf32>
    %c0_3 = arith.constant 0 : index
    %c0_4 = arith.constant 0 : index
    %2 = vector.load %arg4[%c0_3, %c0_4] : memref<32x16xf32, #tpu.memory_space<vmem>>, vector<32x16xf32>
    %c0_5 = arith.constant 0 : index
    %c0_6 = arith.constant 0 : index
    %3 = vector.load %arg5[%c0_5, %c0_6] : memref<32x1xf32, #tpu.memory_space<vmem>>, vector<32x1xf32>
    %4 = tpu.iota {dimensions = array<i32: 1>} : vector<32x2xi32>
    %c0_7 = arith.constant 0 : index
    %c0_8 = arith.constant 0 : index
    %c0_9 = arith.constant 0 : index
    %5 = vector.load %arg1[%c0_7, %c0_8, %c0_9] : memref<2x32x16xf32, #tpu.memory_space<vmem>>, vector<1x32x16xf32>
    %6 = vector.shape_cast %5 : vector<1x32x16xf32> to vector<32x16xf32>
    %cst = arith.constant dense<0.000000e+00> : vector<32xf32>
    %7 = vector.multi_reduction <add>, %6, %cst [1] : vector<32x16xf32> to vector<32xf32>
    %8 = vector.shape_cast %7 : vector<32xf32> to vector<32x1xf32>
    %cst_10 = arith.constant 6.250000e-02 : f32
    %9 = vector.broadcast %cst_10 : f32 to vector<32x1xf32>
    %10 = arith.mulf %8, %9 : vector<32x1xf32>
    %cst_11 = arith.constant dense<0xFF800000> : vector<32xf32>
    %11 = vector.multi_reduction <maximumf>, %6, %cst_11 [1] : vector<32x16xf32> to vector<32xf32>
    %12 = vector.shape_cast %11 : vector<32xf32> to vector<32x1xf32>
    %c0_i32 = arith.constant 0 : i32
    %13 = vector.broadcast %c0_i32 : i32 to vector<32x2xi32>
    %14 = arith.cmpi eq, %4, %13 : vector<32x2xi32>
    %15 = vector.shape_cast %10 : vector<32x1xf32> to vector<32x1xf32>
    %16 = vector.broadcast %15 : vector<32x1xf32> to vector<32x2xf32>
    %17 = vector.shape_cast %12 : vector<32x1xf32> to vector<32x1xf32>
    %18 = vector.broadcast %17 : vector<32x1xf32> to vector<32x2xf32>
    %19 = arith.select %14, %16, %18 : vector<32x2xi1>, vector<32x2xf32>
    %cst_12 = arith.constant dense<0.000000e+00> : vector<16x2xf32>
    %20 = tpu.matmul %0, %19, %cst_12 {dimension_numbers = #tpu.dot_dimension_numbers<[1], [0], [0], [1], [0, 0, 1, 1], [], []>} : vector<16x32xf32>, vector<32x2xf32>, vector<16x2xf32> -> vector<16x2xf32>
    %21 = vector.broadcast %1 : vector<16x1xf32> to vector<16x2xf32>
    %22 = arith.addf %20, %21 : vector<16x2xf32>
    %cst_13 = arith.constant 0.000000e+00 : f32
    %23 = vector.broadcast %cst_13 : f32 to vector<16x2xf32>
    %24 = arith.maximumf %22, %23 : vector<16x2xf32>
    %cst_14 = arith.constant dense<0.000000e+00> : vector<32x2xf32>
    %25 = tpu.matmul %2, %24, %cst_14 {dimension_numbers = #tpu.dot_dimension_numbers<[1], [0], [0], [1], [0, 0, 1, 1], [], []>} : vector<32x16xf32>, vector<16x2xf32>, vector<32x2xf32> -> vector<32x2xf32>
    %26 = vector.broadcast %3 : vector<32x1xf32> to vector<32x2xf32>
    %27 = arith.addf %25, %26 : vector<32x2xf32>
    %cst_15 = arith.constant dense<0.000000e+00> : vector<32xf32>
    %28 = vector.multi_reduction <add>, %27, %cst_15 [1] : vector<32x2xf32> to vector<32xf32>
    %29 = vector.shape_cast %28 : vector<32xf32> to vector<32x1xf32>
    %30 = arith.negf %29 : vector<32x1xf32>
    %31 = math.exp %30 : vector<32x1xf32>
    %cst_16 = arith.constant 1.000000e+00 : f32
    %32 = vector.broadcast %cst_16 : f32 to vector<32x1xf32>
    %33 = arith.addf %32, %31 : vector<32x1xf32>
    %34 = arith.divf %32, %33 : vector<32x1xf32>
    %c0_17 = arith.constant 0 : index
    %c0_18 = arith.constant 0 : index
    %c0_19 = arith.constant 0 : index
    %35 = vector.load %arg1[%c0_17, %c0_18, %c0_19] : memref<2x32x16xf32, #tpu.memory_space<vmem>>, vector<1x32x16xf32>
    %36 = vector.shape_cast %35 : vector<1x32x16xf32> to vector<32x16xf32>
    %37 = vector.broadcast %34 : vector<32x1xf32> to vector<32x16xf32>
    %38 = arith.mulf %36, %37 : vector<32x16xf32>
    %c0_20 = arith.constant 0 : index
    %c0_21 = arith.constant 0 : index
    %c0_22 = arith.constant 0 : index
    %39 = vector.load %arg6[%c0_20, %c0_21, %c0_22] : memref<2x32x16xf32, #tpu.memory_space<vmem>>, vector<1x32x16xf32>
    %40 = vector.shape_cast %39 : vector<1x32x16xf32> to vector<32x16xf32>
    %41 = vector.shape_cast %38 : vector<32x16xf32> to vector<1x32x16xf32>
    tpu.vector_store %arg6[%c0_20, %c0_21, %c0_22], %41 {strides = array<i32>} : memref<2x32x16xf32, #tpu.memory_space<vmem>>, vector<1x32x16xf32>,
    %c1 = arith.constant 1 : index
    %c0_23 = arith.constant 0 : index
    %c0_24 = arith.constant 0 : index
    %42 = vector.load %arg1[%c1, %c0_23, %c0_24] : memref<2x32x16xf32, #tpu.memory_space<vmem>>, vector<1x32x16xf32>
    %43 = vector.shape_cast %42 : vector<1x32x16xf32> to vector<32x16xf32>
    %cst_25 = arith.constant dense<0.000000e+00> : vector<32xf32>
    %44 = vector.multi_reduction <add>, %43, %cst_25 [1] : vector<32x16xf32> to vector<32xf32>
    %45 = vector.shape_cast %44 : vector<32xf32> to vector<32x1xf32>
    %cst_26 = arith.constant 6.250000e-02 : f32
    %46 = vector.broadcast %cst_26 : f32 to vector<32x1xf32>
    %47 = arith.mulf %45, %46 : vector<32x1xf32>
    %cst_27 = arith.constant dense<0xFF800000> : vector<32xf32>
    %48 = vector.multi_reduction <maximumf>, %43, %cst_27 [1] : vector<32x16xf32> to vector<32xf32>
    %49 = vector.shape_cast %48 : vector<32xf32> to vector<32x1xf32>
    %c0_i32_28 = arith.constant 0 : i32
    %50 = vector.broadcast %c0_i32_28 : i32 to vector<32x2xi32>
    %51 = arith.cmpi eq, %4, %50 : vector<32x2xi32>
    %52 = vector.shape_cast %47 : vector<32x1xf32> to vector<32x1xf32>
    %53 = vector.broadcast %52 : vector<32x1xf32> to vector<32x2xf32>
    %54 = vector.shape_cast %49 : vector<32x1xf32> to vector<32x1xf32>
    %55 = vector.broadcast %54 : vector<32x1xf32> to vector<32x2xf32>
    %56 = arith.select %51, %53, %55 : vector<32x2xi1>, vector<32x2xf32>
    %cst_29 = arith.constant dense<0.000000e+00> : vector<16x2xf32>
    %57 = tpu.matmul %0, %56, %cst_29 {dimension_numbers = #tpu.dot_dimension_numbers<[1], [0], [0], [1], [0, 0, 1, 1], [], []>} : vector<16x32xf32>, vector<32x2xf32>, vector<16x2xf32> -> vector<16x2xf32>
    %58 = vector.broadcast %1 : vector<16x1xf32> to vector<16x2xf32>
    %59 = arith.addf %57, %58 : vector<16x2xf32>
    %cst_30 = arith.constant 0.000000e+00 : f32
    %60 = vector.broadcast %cst_30 : f32 to vector<16x2xf32>
    %61 = arith.maximumf %59, %60 : vector<16x2xf32>
    %cst_31 = arith.constant dense<0.000000e+00> : vector<32x2xf32>
    %62 = tpu.matmul %2, %61, %cst_31 {dimension_numbers = #tpu.dot_dimension_numbers<[1], [0], [0], [1], [0, 0, 1, 1], [], []>} : vector<32x16xf32>, vector<16x2xf32>, vector<32x2xf32> -> vector<32x2xf32>
    %63 = vector.broadcast %3 : vector<32x1xf32> to vector<32x2xf32>
    %64 = arith.addf %62, %63 : vector<32x2xf32>
    %cst_32 = arith.constant dense<0.000000e+00> : vector<32xf32>
    %65 = vector.multi_reduction <add>, %64, %cst_32 [1] : vector<32x2xf32> to vector<32xf32>
    %66 = vector.shape_cast %65 : vector<32xf32> to vector<32x1xf32>
    %67 = arith.negf %66 : vector<32x1xf32>
    %68 = math.exp %67 : vector<32x1xf32>
    %cst_33 = arith.constant 1.000000e+00 : f32
    %69 = vector.broadcast %cst_33 : f32 to vector<32x1xf32>
    %70 = arith.addf %69, %68 : vector<32x1xf32>
    %71 = arith.divf %69, %70 : vector<32x1xf32>
    %c1_34 = arith.constant 1 : index
    %c0_35 = arith.constant 0 : index
    %c0_36 = arith.constant 0 : index
    %72 = vector.load %arg1[%c1_34, %c0_35, %c0_36] : memref<2x32x16xf32, #tpu.memory_space<vmem>>, vector<1x32x16xf32>
    %73 = vector.shape_cast %72 : vector<1x32x16xf32> to vector<32x16xf32>
    %74 = vector.broadcast %71 : vector<32x1xf32> to vector<32x16xf32>
    %75 = arith.mulf %73, %74 : vector<32x16xf32>
    %c1_37 = arith.constant 1 : index
    %c0_38 = arith.constant 0 : index
    %c0_39 = arith.constant 0 : index
    %76 = vector.load %arg6[%c1_37, %c0_38, %c0_39] : memref<2x32x16xf32, #tpu.memory_space<vmem>>, vector<1x32x16xf32>
    %77 = vector.shape_cast %76 : vector<1x32x16xf32> to vector<32x16xf32>
    %78 = vector.shape_cast %75 : vector<32x16xf32> to vector<1x32x16xf32>
    tpu.vector_store %arg6[%c1_37, %c0_38, %c0_39], %78 {strides = array<i32>} : memref<2x32x16xf32, #tpu.memory_space<vmem>>, vector<1x32x16xf32>,
    return
  }
  func.func @transform_0(%arg0: i32) -> (i32, i32, i32) {
    %c0_i32 = arith.constant 0 : i32
    %c0_i32_0 = arith.constant 0 : i32
    %c0_i32_1 = arith.constant 0 : i32
    return %arg0, %c0_i32, %c0_i32_0 : i32, i32, i32
  }
  func.func @transform_1(%arg0: i32) -> (i32, i32) {
    %c0_i32 = arith.constant 0 : i32
    %c0_i32_0 = arith.constant 0 : i32
    %c0_i32_1 = arith.constant 0 : i32
    return %c0_i32, %c0_i32_0 : i32, i32
  }
  func.func @transform_2(%arg0: i32) -> (i32, i32) {
    %c0_i32 = arith.constant 0 : i32
    %c0_i32_0 = arith.constant 0 : i32
    %c0_i32_1 = arith.constant 0 : i32
    return %c0_i32, %c0_i32_0 : i32, i32
  }
  func.func @transform_3(%arg0: i32) -> (i32, i32) {
    %c0_i32 = arith.constant 0 : i32
    %c0_i32_0 = arith.constant 0 : i32
    %c0_i32_1 = arith.constant 0 : i32
    return %c0_i32, %c0_i32_0 : i32, i32
  }
  func.func @transform_4(%arg0: i32) -> (i32, i32) {
    %c0_i32 = arith.constant 0 : i32
    %c0_i32_0 = arith.constant 0 : i32
    %c0_i32_1 = arith.constant 0 : i32
    return %c0_i32, %c0_i32_0 : i32, i32
  }
  func.func @transform_5(%arg0: i32) -> (i32, i32, i32) {
    %c0_i32 = arith.constant 0 : i32
    %c0_i32_0 = arith.constant 0 : i32
    %c0_i32_1 = arith.constant 0 : i32
    return %arg0, %c0_i32, %c0_i32_0 : i32, i32, i32
  }
}

</mosaic_0001>

<llo_original>
// kernel: tam_block_2d.1
$region0: #{tam_block_2d.1}
  #allocation0 [shape = 'u32[]', space=smem, size = 0x4, offset = 0x4, fixed_abs, tag = 'smem constant byte address 0x4 - core index']
  #allocation1 [shape = 'u32[72,128]{1,0:T(1,128)}', space=vmem, size = 0x9000, scoped, tag = 'internal scratch']
  %s0 = inlined_call_operand.vmem [shape: f32[2,32,16], index: 0, kind: input, shape index: {}]
  %s1 = inlined_call_operand.vmem [shape: f32[16,32], index: 1, kind: input, shape index: {}]
  %s2 = inlined_call_operand.vmem [shape: f32[16,1], index: 2, kind: input, shape index: {}]
  %s3 = inlined_call_operand.vmem [shape: f32[32,16], index: 3, kind: input, shape index: {}]
  %s4 = inlined_call_operand.vmem [shape: f32[32,1], index: 4, kind: input, shape index: {}]
  %s5 = inlined_call_operand.vmem [shape: f32[2,32,16], index: 5, kind: output, shape index: {}]
  %s6 = sld [smem:[#allocation0]]
  $region30: #{tam_block_2d.1} parent=0
    _
  %s8 = ssub.s32 1, %s6
  %s9 = scalar_select 0, %s8, %s6
  // Predicated region
  $region2: #{tam_block_2d.1} parent=0 // pred_check
    _
  $region3: #{tam_block_2d.1} parent=0 // pred_check_branch
    %11 = sbr.rel (0) target = $region5
  $region4: #{tam_block_2d.1} parent=0 // pred_region
    _
  $region5: #{tam_block_2d.1} parent=0 // pred_fallthru
    _
  // Predicated region
  $region6: #{tam_block_2d.1} parent=0 // pred_check
    _
  $region7: #{tam_block_2d.1} parent=0 // pred_check_branch
    %13 = sbr.rel (0) target = $region9
  $region8: #{tam_block_2d.1} parent=0 // pred_region
    _
  $region9: #{tam_block_2d.1} parent=0 // pred_fallthru
    _
  // Predicated region
  $region10: #{tam_block_2d.1} parent=0 // pred_check
    _
  $region11: #{tam_block_2d.1} parent=0 // pred_check_branch
    %15 = sbr.rel (0) target = $region13
  $region12: #{tam_block_2d.1} parent=0 // pred_region
    _
  $region13: #{tam_block_2d.1} parent=0 // pred_fallthru
    _
  // Predicated region
  $region14: #{tam_block_2d.1} parent=0 // pred_check
    _
  $region15: #{tam_block_2d.1} parent=0 // pred_check_branch
    %17 = sbr.rel (0) target = $region17
  $region16: #{tam_block_2d.1} parent=0 // pred_region
    _
  $region17: #{tam_block_2d.1} parent=0 // pred_fallthru
    _
  // Predicated region
  $region18: #{tam_block_2d.1} parent=0 // pred_check
    _
  $region19: #{tam_block_2d.1} parent=0 // pred_check_branch
    %19 = sbr.rel (0) target = $region21
  $region20: #{tam_block_2d.1} parent=0 // pred_region
    _
  $region21: #{tam_block_2d.1} parent=0 // pred_fallthru
    _
  %v20 = vld [vmem:[%s1] sm:$0xff]
  %v21 = vld [vmem:[%s1 + $0x8] sm:$0xff]
  %v22 = vld [vmem:[%s2] sm:$0xff]
  %v23 = vld [vmem:[%s2 + $0x8] sm:$0xff]
  %v24 = vld [vmem:[%s3] sm:$0xff]
  %v25 = vld [vmem:[%s3 + $0x8] sm:$0xff]
  %v26 = vld [vmem:[%s3 + $0x10] sm:$0xff]
  %v27 = vld [vmem:[%s3 + $0x18] sm:$0xff]
  %v28 = vld [vmem:[%s4] sm:$0xff]
  %v29 = vld [vmem:[%s4 + $0x8] sm:$0xff]
  %v30 = vld [vmem:[%s4 + $0x10] sm:$0xff]
  %v31 = vld [vmem:[%s4 + $0x18] sm:$0xff]
  %v32 = vlaneseq
  %v33 = vand.u32 %v32, 127
  %v34 = vld [vmem:[%s0] sm:$0xff]
  %v35 = vld [vmem:[%s0 + $0x8] sm:$0xff]
  %v36 = vld [vmem:[%s0 + $0x10] sm:$0xff]
  %v37 = vld [vmem:[%s0 + $0x18] sm:$0xff]
  %vm38 = vcmask 130048
  %v39 = vsel %vm38, %v34, 0.0
  %40 = vadd.xlane.f32.xlu0 %v39
  %v41 = vpop.xlane.xlu0 %40
  %v42 = vsel %vm38, %v35, 0.0
  %43 = vadd.xlane.f32.xlu0 %v42
  %v44 = vpop.xlane.xlu0 %43
  %v45 = vsel %vm38, %v36, 0.0
  %46 = vadd.xlane.f32.xlu0 %v45
  %v47 = vpop.xlane.xlu0 %46
  %v48 = vsel %vm38, %v37, 0.0
  %49 = vadd.xlane.f32.xlu0 %v48
  %v50 = vpop.xlane.xlu0 %49
  %v51 = vmul.f32 %v41, 0.0625
  %v52 = vmul.f32 %v44, 0.0625
  %v53 = vmul.f32 %v47, 0.0625
  %v54 = vmul.f32 %v50, 0.0625
  %v55 = vsel %vm38, %v34, -inf
  %56 = vmax.xlane.f32.xlu0 %v55
  %v57 = vpop.xlane.xlu0 %56
  %v58 = vsel %vm38, %v35, -inf
  %59 = vmax.xlane.f32.xlu0 %v58
  %v60 = vpop.xlane.xlu0 %59
  %v61 = vsel %vm38, %v36, -inf
  %62 = vmax.xlane.f32.xlu0 %v61
  %v63 = vpop.xlane.xlu0 %62
  %v64 = vsel %vm38, %v37, -inf
  %65 = vmax.xlane.f32.xlu0 %v64
  %v66 = vpop.xlane.xlu0 %65
  %vm67 = vcmp.eq.s32.totalorder %v33, 0
  %v68 = vsel %vm67, %v51, %v57
  %v69 = vsel %vm67, %v52, %v60
  %v70 = vsel %vm67, %v53, %v63
  %v71 = vsel %vm67, %v54, %v66
  %73 = vset.pattern.permute.xlu0 0
  %74 = vperm.xlu0 %73, %v22
  %v75 = vpop.permute.xlu0 %74
  %78 = vset.pattern.permute.xlu0 0
  %79 = vperm.xlu0 %78, %v23
  %v80 = vpop.permute.xlu0 %79
  %vm82 = vcmask 261120
  %v84 = vsel %vm82, %v20, 0
  %v87 = vsel %vm82, %v21, 0
  %89 = vmatpush.msra.mxu0 0.0
  %90 = vmatpush.msra.mxu0 0.0
  %91 = vmatpush.msra.mxu0 0.0
  %92 = vmatpush.msra.mxu0 0.0
  %93 = vmatpush.msra.mxu0 0.0
  %94 = vmatpush.msra.mxu0 0.0
  %95 = vmatpush.msra.mxu0 0.0
  %96 = vmatpush.msra.mxu0 0.0
  %97 = vmatpush.msra.mxu0 0.0
  %98 = vmatpush.msra.mxu0 0.0
  %99 = vmatpush.msra.mxu0 0.0
  %100 = vmatpush.msra.mxu0 0.0
  %101 = vmatpush.msra.mxu0 %v71
  %102 = vmatpush.msra.mxu0 %v70
  %103 = vmatpush.msra.mxu0 %v69
  %104 = vmatpush.msra.mxu0 %v68
  %105 = vmatmul.f32.gmra.mxu0 %v84
  %v106 = vpop.f32.mrf.mxu0
  %v107 = vadd.f32 %v75, %v106
  %108 = vmatmul.f32.gmra.mxu0 %v87
  %v109 = vpop.f32.mrf.mxu0
  %v110 = vadd.f32 %v80, %v109
  %111 = vdwg.mxu0
  %v112 = vmax.f32 %v107, 0.0
  %v113 = vmax.f32 %v110, 0.0
  %115 = vset.pattern.permute.xlu0 0
  %116 = vperm.xlu0 %115, %v28
  %v117 = vpop.permute.xlu0 %116
  %120 = vset.pattern.permute.xlu0 0
  %121 = vperm.xlu0 %120, %v29
  %v122 = vpop.permute.xlu0 %121
  %125 = vset.pattern.permute.xlu0 0
  %126 = vperm.xlu0 %125, %v30
  %v127 = vpop.permute.xlu0 %126
  %130 = vset.pattern.permute.xlu0 0
  %131 = vperm.xlu0 %130, %v31
  %v132 = vpop.permute.xlu0 %131
  %v135 = vsel %vm38, %v24, 0
  %v138 = vsel %vm38, %v25, 0
  %v141 = vsel %vm38, %v26, 0
  %v144 = vsel %vm38, %v27, 0
  %146 = vmatpush.msra.mxu0 0.0
  %147 = vmatpush.msra.mxu0 0.0
  %148 = vmatpush.msra.mxu0 0.0
  %149 = vmatpush.msra.mxu0 0.0
  %150 = vmatpush.msra.mxu0 0.0
  %151 = vmatpush.msra.mxu0 0.0
  %152 = vmatpush.msra.mxu0 0.0
  %153 = vmatpush.msra.mxu0 0.0
  %154 = vmatpush.msra.mxu0 0.0
  %155 = vmatpush.msra.mxu0 0.0
  %156 = vmatpush.msra.mxu0 0.0
  %157 = vmatpush.msra.mxu0 0.0
  %158 = vmatpush.msra.mxu0 0.0
  %159 = vmatpush.msra.mxu0 0.0
  %160 = vmatpush.msra.mxu0 %v113
  %161 = vmatpush.msra.mxu0 %v112
  %162 = vmatmul.f32.gmra.mxu0 %v135
  %v163 = vpop.f32.mrf.mxu0
  %v164 = vadd.f32 %v117, %v163
  %165 = vmatmul.f32.gmra.mxu0 %v138
  %v166 = vpop.f32.mrf.mxu0
  %v167 = vadd.f32 %v122, %v166
  %168 = vmatmul.f32.gmra.mxu0 %v141
  %v169 = vpop.f32.mrf.mxu0
  %v170 = vadd.f32 %v127, %v169
  %171 = vmatmul.f32.gmra.mxu0 %v144
  %v172 = vpop.f32.mrf.mxu0
  %v173 = vadd.f32 %v132, %v172
  %174 = vdwg.mxu0
  %vm175 = vcmask 15360
  %v176 = vsel %vm175, %v164, 0.0
  %177 = vadd.xlane.f32.xlu0 %v176
  %v178 = vpop.xlane.xlu0 %177
  %v179 = vsel %vm175, %v167, 0.0
  %180 = vadd.xlane.f32.xlu0 %v179
  %v181 = vpop.xlane.xlu0 %180
  %v182 = vsel %vm175, %v170, 0.0
  %183 = vadd.xlane.f32.xlu0 %v182
  %v184 = vpop.xlane.xlu0 %183
  %v185 = vsel %vm175, %v173, 0.0
  %186 = vadd.xlane.f32.xlu0 %v185
  %v187 = vpop.xlane.xlu0 %186
  %v188 = vxor.u32 %v178, 2147483648
  %v189 = vxor.u32 %v181, 2147483648
  %v190 = vxor.u32 %v184, 2147483648
  %v191 = vxor.u32 %v187, 2147483648
  %v192 = vmul.f32 %v188, 1.442695
  %v193 = vpow.pop %v192
  %v194 = vmul.f32 %v189, 1.442695
  %v195 = vpow.pop %v194
  %v196 = vmul.f32 %v190, 1.442695
  %v197 = vpow.pop %v196
  %v198 = vmul.f32 %v191, 1.442695
  %v199 = vpow.pop %v198
  %v200 = vadd.f32 %v193, 1.0
  %v201 = vadd.f32 %v195, 1.0
  %v202 = vadd.f32 %v197, 1.0
  %v203 = vadd.f32 %v199, 1.0
  %v204 = vrcp.pop %v200
  %v205 = vmul.f32 %v200, %v204
  %v206 = vsub.f32 1.0, %v205
  %v207 = vmul.f32 %v204, %v206
  %v208 = vadd.f32 %v204, %v207
  %vm209 = vweird.f32 %v200
  %vm210 = vweird.f32 %v204
  %vm211 = vmor %vm209, %vm210
  %v212 = vsel %vm211, %v204, %v208
  %v213 = vand.u32 2147483647, %v200
  %vm214 = vcmp.eq.f32.partialorder %v213, 8.507059e+37
  %v215 = vand.u32 %v200, 2147483648
  %v216 = vor.u32 1.1754944e-38, %v215
  %v217 = vsel %vm214, %v216, %v212
  %v218 = vmul.f32 1.0, %v217
  %v219 = vrcp.pop %v201
  %v220 = vmul.f32 %v201, %v219
  %v221 = vsub.f32 1.0, %v220
  %v222 = vmul.f32 %v219, %v221
  %v223 = vadd.f32 %v219, %v222
  %vm224 = vweird.f32 %v201
  %vm225 = vweird.f32 %v219
  %vm226 = vmor %vm224, %vm225
  %v227 = vsel %vm226, %v219, %v223
  %v228 = vand.u32 2147483647, %v201
  %vm229 = vcmp.eq.f32.partialorder %v228, 8.507059e+37
  %v230 = vand.u32 %v201, 2147483648
  %v231 = vor.u32 1.1754944e-38, %v230
  %v232 = vsel %vm229, %v231, %v227
  %v233 = vmul.f32 1.0, %v232
  %v234 = vrcp.pop %v202
  %v235 = vmul.f32 %v202, %v234
  %v236 = vsub.f32 1.0, %v235
  %v237 = vmul.f32 %v234, %v236
  %v238 = vadd.f32 %v234, %v237
  %vm239 = vweird.f32 %v202
  %vm240 = vweird.f32 %v234
  %vm241 = vmor %vm239, %vm240
  %v242 = vsel %vm241, %v234, %v238
  %v243 = vand.u32 2147483647, %v202
  %vm244 = vcmp.eq.f32.partialorder %v243, 8.507059e+37
  %v245 = vand.u32 %v202, 2147483648
  %v246 = vor.u32 1.1754944e-38, %v245
  %v247 = vsel %vm244, %v246, %v242
  %v248 = vmul.f32 1.0, %v247
  %v249 = vrcp.pop %v203
  %v250 = vmul.f32 %v203, %v249
  %v251 = vsub.f32 1.0, %v250
  %v252 = vmul.f32 %v249, %v251
  %v253 = vadd.f32 %v249, %v252
  %vm254 = vweird.f32 %v203
  %vm255 = vweird.f32 %v249
  %vm256 = vmor %vm254, %vm255
  %v257 = vsel %vm256, %v249, %v253
  %v258 = vand.u32 2147483647, %v203
  %vm259 = vcmp.eq.f32.partialorder %v258, 8.507059e+37
  %v260 = vand.u32 %v203, 2147483648
  %v261 = vor.u32 1.1754944e-38, %v260
  %v262 = vsel %vm259, %v261, %v257
  %v263 = vmul.f32 1.0, %v262
  %v264 = vmul.f32 %v34, %v218
  %v265 = vmul.f32 %v35, %v233
  %v266 = vmul.f32 %v36, %v248
  %v267 = vmul.f32 %v37, %v263
  %268 = vst.msk [vmem:[%s5] sm:$0xff] %vm38, %v264
  %269 = vst.msk [vmem:[%s5 + $0x8] sm:$0xff] %vm38, %v265
  %270 = vst.msk [vmem:[%s5 + $0x10] sm:$0xff] %vm38, %v266
  %271 = vst.msk [vmem:[%s5 + $0x18] sm:$0xff] %vm38, %v267
  %s272 = scalar_lea.vmem %s0, 32
  %v273 = vld [vmem:[%s272] sm:$0xff]
  %v274 = vld [vmem:[%s272 + $0x8] sm:$0xff]
  %v275 = vld [vmem:[%s272 + $0x10] sm:$0xff]
  %v276 = vld [vmem:[%s272 + $0x18] sm:$0xff]
  %v277 = vsel %vm38, %v273, 0.0
  %278 = vadd.xlane.f32.xlu0 %v277
  %v279 = vpop.xlane.xlu0 %278
  %v280 = vsel %vm38, %v274, 0.0
  %281 = vadd.xlane.f32.xlu0 %v280
  %v282 = vpop.xlane.xlu0 %281
  %v283 = vsel %vm38, %v275, 0.0
  %284 = vadd.xlane.f32.xlu0 %v283
  %v285 = vpop.xlane.xlu0 %284
  %v286 = vsel %vm38, %v276, 0.0
  %287 = vadd.xlane.f32.xlu0 %v286
  %v288 = vpop.xlane.xlu0 %287
  %v289 = vmul.f32 %v279, 0.0625
  %v290 = vmul.f32 %v282, 0.0625
  %v291 = vmul.f32 %v285, 0.0625
  %v292 = vmul.f32 %v288, 0.0625
  %v293 = vsel %vm38, %v273, -inf
  %294 = vmax.xlane.f32.xlu0 %v293
  %v295 = vpop.xlane.xlu0 %294
  %v296 = vsel %vm38, %v274, -inf
  %297 = vmax.xlane.f32.xlu0 %v296
  %v298 = vpop.xlane.xlu0 %297
  %v299 = vsel %vm38, %v275, -inf
  %300 = vmax.xlane.f32.xlu0 %v299
  %v301 = vpop.xlane.xlu0 %300
  %v302 = vsel %vm38, %v276, -inf
  %303 = vmax.xlane.f32.xlu0 %v302
  %v304 = vpop.xlane.xlu0 %303
  %v305 = vsel %vm67, %v289, %v295
  %v306 = vsel %vm67, %v290, %v298
  %v307 = vsel %vm67, %v291, %v301
  %v308 = vsel %vm67, %v292, %v304
  %309 = vmatpush.msra.mxu0 0.0
  %310 = vmatpush.msra.mxu0 0.0
  %311 = vmatpush.msra.mxu0 0.0
  %312 = vmatpush.msra.mxu0 0.0
  %313 = vmatpush.msra.mxu0 0.0
  %314 = vmatpush.msra.mxu0 0.0
  %315 = vmatpush.msra.mxu0 0.0
  %316 = vmatpush.msra.mxu0 0.0
  %317 = vmatpush.msra.mxu0 0.0
  %318 = vmatpush.msra.mxu0 0.0
  %319 = vmatpush.msra.mxu0 0.0
  %320 = vmatpush.msra.mxu0 0.0
  %321 = vmatpush.msra.mxu0 %v308
  %322 = vmatpush.msra.mxu0 %v307
  %323 = vmatpush.msra.mxu0 %v306
  %324 = vmatpush.msra.mxu0 %v305
  %325 = vmatmul.f32.gmra.mxu0 %v84
  %v326 = vpop.f32.mrf.mxu0
  %v327 = vadd.f32 %v75, %v326
  %328 = vmatmul.f32.gmra.mxu0 %v87
  %v329 = vpop.f32.mrf.mxu0
  %v330 = vadd.f32 %v80, %v329
  %331 = vdwg.mxu0
  %v332 = vmax.f32 %v327, 0.0
  %v333 = vmax.f32 %v330, 0.0
  %334 = vmatpush.msra.mxu0 0.0
  %335 = vmatpush.msra.mxu0 0.0
  %336 = vmatpush.msra.mxu0 0.0
  %337 = vmatpush.msra.mxu0 0.0
  %338 = vmatpush.msra.mxu0 0.0
  %339 = vmatpush.msra.mxu0 0.0
  %340 = vmatpush.msra.mxu0 0.0
  %341 = vmatpush.msra.mxu0 0.0
  %342 = vmatpush.msra.mxu0 0.0
  %343 = vmatpush.msra.mxu0 0.0
  %344 = vmatpush.msra.mxu0 0.0
  %345 = vmatpush.msra.mxu0 0.0
  %346 = vmatpush.msra.mxu0 0.0
  %347 = vmatpush.msra.mxu0 0.0
  %348 = vmatpush.msra.mxu0 %v333
  %349 = vmatpush.msra.mxu0 %v332
  %350 = vmatmul.f32.gmra.mxu0 %v135
  %v351 = vpop.f32.mrf.mxu0
  %v352 = vadd.f32 %v117, %v351
  %353 = vmatmul.f32.gmra.mxu0 %v138
  %v354 = vpop.f32.mrf.mxu0
  %v355 = vadd.f32 %v122, %v354
  %356 = vmatmul.f32.gmra.mxu0 %v141
  %v357 = vpop.f32.mrf.mxu0
  %v358 = vadd.f32 %v127, %v357
  %359 = vmatmul.f32.gmra.mxu0 %v144
  %v360 = vpop.f32.mrf.mxu0
  %v361 = vadd.f32 %v132, %v360
  %362 = vdwg.mxu0
  %v363 = vsel %vm175, %v352, 0.0
  %364 = vadd.xlane.f32.xlu0 %v363
  %v365 = vpop.xlane.xlu0 %364
  %v366 = vsel %vm175, %v355, 0.0
  %367 = vadd.xlane.f32.xlu0 %v366
  %v368 = vpop.xlane.xlu0 %367
  %v369 = vsel %vm175, %v358, 0.0
  %370 = vadd.xlane.f32.xlu0 %v369
  %v371 = vpop.xlane.xlu0 %370
  %v372 = vsel %vm175, %v361, 0.0
  %373 = vadd.xlane.f32.xlu0 %v372
  %v374 = vpop.xlane.xlu0 %373
  %v375 = vxor.u32 %v365, 2147483648
  %v376 = vxor.u32 %v368, 2147483648
  %v377 = vxor.u32 %v371, 2147483648
  %v378 = vxor.u32 %v374, 2147483648
  %v379 = vmul.f32 %v375, 1.442695
  %v380 = vpow.pop %v379
  %v381 = vmul.f32 %v376, 1.442695
  %v382 = vpow.pop %v381
  %v383 = vmul.f32 %v377, 1.442695
  %v384 = vpow.pop %v383
  %v385 = vmul.f32 %v378, 1.442695
  %v386 = vpow.pop %v385
  %v387 = vadd.f32 %v380, 1.0
  %v388 = vadd.f32 %v382, 1.0
  %v389 = vadd.f32 %v384, 1.0
  %v390 = vadd.f32 %v386, 1.0
  %v391 = vrcp.pop %v387
  %v392 = vmul.f32 %v387, %v391
  %v393 = vsub.f32 1.0, %v392
  %v394 = vmul.f32 %v391, %v393
  %v395 = vadd.f32 %v391, %v394
  %vm396 = vweird.f32 %v387
  %vm397 = vweird.f32 %v391
  %vm398 = vmor %vm396, %vm397
  %v399 = vsel %vm398, %v391, %v395
  %v400 = vand.u32 2147483647, %v387
  %vm401 = vcmp.eq.f32.partialorder %v400, 8.507059e+37
  %v402 = vand.u32 %v387, 2147483648
  %v403 = vor.u32 1.1754944e-38, %v402
  %v404 = vsel %vm401, %v403, %v399
  %v405 = vmul.f32 1.0, %v404
  %v406 = vrcp.pop %v388
  %v407 = vmul.f32 %v388, %v406
  %v408 = vsub.f32 1.0, %v407
  %v409 = vmul.f32 %v406, %v408
  %v410 = vadd.f32 %v406, %v409
  %vm411 = vweird.f32 %v388
  %vm412 = vweird.f32 %v406
  %vm413 = vmor %vm411, %vm412
  %v414 = vsel %vm413, %v406, %v410
  %v415 = vand.u32 2147483647, %v388
  %vm416 = vcmp.eq.f32.partialorder %v415, 8.507059e+37
  %v417 = vand.u32 %v388, 2147483648
  %v418 = vor.u32 1.1754944e-38, %v417
  %v419 = vsel %vm416, %v418, %v414
  %v420 = vmul.f32 1.0, %v419
  %v421 = vrcp.pop %v389
  %v422 = vmul.f32 %v389, %v421
  %v423 = vsub.f32 1.0, %v422
  %v424 = vmul.f32 %v421, %v423
  %v425 = vadd.f32 %v421, %v424
  %vm426 = vweird.f32 %v389
  %vm427 = vweird.f32 %v421
  %vm428 = vmor %vm426, %vm427
  %v429 = vsel %vm428, %v421, %v425
  %v430 = vand.u32 2147483647, %v389
  %vm431 = vcmp.eq.f32.partialorder %v430, 8.507059e+37
  %v432 = vand.u32 %v389, 2147483648
  %v433 = vor.u32 1.1754944e-38, %v432
  %v434 = vsel %vm431, %v433, %v429
  %v435 = vmul.f32 1.0, %v434
  %v436 = vrcp.pop %v390
  %v437 = vmul.f32 %v390, %v436
  %v438 = vsub.f32 1.0, %v437
  %v439 = vmul.f32 %v436, %v438
  %v440 = vadd.f32 %v436, %v439
  %vm441 = vweird.f32 %v390
  %vm442 = vweird.f32 %v436
  %vm443 = vmor %vm441, %vm442
  %v444 = vsel %vm443, %v436, %v440
  %v445 = vand.u32 2147483647, %v390
  %vm446 = vcmp.eq.f32.partialorder %v445, 8.507059e+37
  %v447 = vand.u32 %v390, 2147483648
  %v448 = vor.u32 1.1754944e-38, %v447
  %v449 = vsel %vm446, %v448, %v444
  %v450 = vmul.f32 1.0, %v449
  %v451 = vmul.f32 %v273, %v405
  %v452 = vmul.f32 %v274, %v420
  %v453 = vmul.f32 %v275, %v435
  %v454 = vmul.f32 %v276, %v450
  %s455 = scalar_lea.vmem %s5, 32
  %456 = vst.msk [vmem:[%s455] sm:$0xff] %vm38, %v451
  %457 = vst.msk [vmem:[%s455 + $0x8] sm:$0xff] %vm38, %v452
  %458 = vst.msk [vmem:[%s455 + $0x10] sm:$0xff] %vm38, %v453
  %459 = vst.msk [vmem:[%s455 + $0x18] sm:$0xff] %vm38, %v454
  // Predicated region
  $region22: #{tam_block_2d.1} parent=0 // pred_check
    _
  $region23: #{tam_block_2d.1} parent=0 // pred_check_branch
    %461 = sbr.rel (0) target = $region25
  $region24: #{tam_block_2d.1} parent=0 // pred_region
    _
  $region25: #{tam_block_2d.1} parent=0 // pred_fallthru
    _
  // Predicated region
  $region26: #{tam_block_2d.1} parent=0 // pred_check
    _
  $region27: #{tam_block_2d.1} parent=0 // pred_check_branch
    %463 = sbr.rel (0) target = $region29
  $region28: #{tam_block_2d.1} parent=0 // pred_region
    _
  $region29: #{tam_block_2d.1} parent=0 // pred_fallthru
    _

</llo_original>
